<compile_context>
chip_gen: v7x
topology: tpu7x:2x2x1
jax: 0.10.0
libtpu: 0.0.40
codegen_flags: <defaults>
</compile_context>

<pallas_src>
import functools

import jax
import jax.numpy as jnp
from jax import lax
from jax.experimental import pallas as pl
from jax.experimental.pallas import tpu as pltpu

_MIB = 1024 * 1024


def _contrastive_loss_kernel(f1_ref, f2_ref, out_ref, acc_ref, *,
                             margin, batch, tile_b, num_tiles,
                             tiles_per_chunk, needs_mask):
    c = pl.program_id(0)          # parallel chunk id
    t = pl.program_id(1)          # sequential tile id within the chunk
    block_idx = c * tiles_per_chunk + t

    @pl.when(t == 0)
    def _():
        acc_ref[...] = jnp.zeros_like(acc_ref)

    f1 = f1_ref[...].astype(jnp.float32)
    f2 = f2_ref[...].astype(jnp.float32)

    # Three lane reductions over the (tile_b, D) tile.
    ss1 = jnp.sum(f1 * f1, axis=1, keepdims=True)   # ||f1||^2   (tile_b, 1)
    ss2 = jnp.sum(f2 * f2, axis=1, keepdims=True)   # ||f2||^2   (tile_b, 1)
    dot = jnp.sum(f1 * f2, axis=1, keepdims=True)   # f1 . f2    (tile_b, 1)

    # 1e-24 = (1e-12)^2: rsqrt(max(ss, eps^2)) == 1/clamp_min(||f||, 1e-12).
    # Zero rows: dot == 0 -> sim == 0 -> contribution margin^2 (PyTorch match).
    inv1 = lax.rsqrt(jnp.maximum(ss1, jnp.float32(1e-24)))
    inv2 = lax.rsqrt(jnp.maximum(ss2, jnp.float32(1e-24)))
    sim = dot * inv1 * inv2

    clamped = jnp.maximum(sim + jnp.float32(margin), jnp.float32(0.0))
    per_row = clamped * clamped                      # (tile_b, 1)

    if needs_mask:
        # Only blocks whose logical row range extends past `batch` (the ragged
        # last tile, or clamped duplicate blocks) pay for the mask.
        is_edge = (block_idx + 1) * tile_b > batch

        @pl.when(is_edge)
        def _():
            row_id = block_idx * tile_b + lax.broadcasted_iota(
                jnp.int32, per_row.shape, 0)
            acc_ref[...] += jnp.where(row_id < batch, per_row,
                                      jnp.float32(0.0))

        @pl.when(jnp.logical_not(is_edge))
        def _():
            acc_ref[...] += per_row
    else:
        acc_ref[...] += per_row

    # Epilogue (once per chunk): cross-sublane reduce + lane-dense writeback.
    @pl.when(t == pl.num_programs(1) - 1)
    def _():
        total = jnp.sum(acc_ref[...])
        out_ref[...] = jnp.full(out_ref.shape, total, dtype=jnp.float32)


def contrastive_loss(features1, features2, margin=0.5, temperature=0.07,
                     tile_b=None, n_par=None):
    """Pallas TPU implementation of ContrastiveLoss.forward.

    features1, features2: (B, D) arrays. Returns a scalar float32 loss.
    """
    del temperature  # unused by the PyTorch forward pass
    assert features1.shape == features2.shape and features1.ndim == 2
    B, D = features1.shape
    itemsize = jnp.dtype(features1.dtype).itemsize

    # ---- generation-aware VMEM budget / byte-based tile sizing -------------
    try:
        vmem_cap = int(pltpu.get_tpu_info().vmem_capacity_bytes)
    except Exception:
        vmem_cap = 64 * _MIB                         # conservative (v7x)

    # 2 inputs x 2 pipeline buffers must fit the pipelined budget; target a
    # ~4 MiB block per input per buffer (measured 85%+ of HBM roofline).
    pipeline_budget = min(int(0.40 * vmem_cap), 40 * _MIB)
    per_block_target = max(min(4 * _MIB, pipeline_budget // 4), 64 * 1024)

    if tile_b is None:
        tile_b = per_block_target // max(D * itemsize, 1)
        tile_b = max(8, (tile_b // 8) * 8)           # sublane-aligned
    # TODO(synk): for very large D (one 8-row block >> budget) add a second
    # "arbitrary" grid axis over D and accumulate ss1/ss2/dot in VMEM scratch.
    if B <= tile_b:
        tile_b = B                                   # full-dim block (legal)

    num_tiles = pl.cdiv(B, tile_b)

    # ---- parallel chunking (both TensorCores on v7x) ------------------------
    if n_par is None:
        # Avoid a wasted duplicate block on single-core chips for small odd
        # tile counts; otherwise split the HBM stream across 2 chunks.
        n_par = 2 if (num_tiles >= 2 and
                      (num_tiles % 2 == 0 or num_tiles >= 8)) else 1
    n_par = max(1, min(int(n_par), num_tiles))
    tiles_per_chunk = pl.cdiv(num_tiles, n_par)
    oob_blocks = n_par * tiles_per_chunk > num_tiles
    needs_mask = (B % tile_b != 0) or oob_blocks

    if oob_blocks:
        # Clamp out-of-range block indices to the last valid tile; the in-kernel
        # row-id mask zeroes their (duplicated) contribution.
        def in_map(c, t):
            return (jnp.minimum(c * tiles_per_chunk + t, num_tiles - 1), 0)
    else:
        def in_map(c, t):
            return (c * tiles_per_chunk + t, 0)

    # ---- explicit scoped-VMEM limit matching the tile footprint -------------
    block_bytes = tile_b * D * itemsize
    block_bytes_f32 = tile_b * D * 4
    acc_bytes = tile_b * 128 * 4                     # (tile_b,1) lane-padded
    vmem_need = 4 * block_bytes + 3 * block_bytes_f32 + acc_bytes + 2 * _MIB
    vmem_limit = int(min(max(vmem_need, 32 * _MIB), int(0.9 * vmem_cap)))

    kernel = functools.partial(
        _contrastive_loss_kernel, margin=float(margin), batch=B,
        tile_b=tile_b, num_tiles=num_tiles, tiles_per_chunk=tiles_per_chunk,
        needs_mask=needs_mask)

    partials = pl.pallas_call(
        kernel,
        out_shape=jax.ShapeDtypeStruct((n_par, 8, 128), jnp.float32),
        grid=(n_par, tiles_per_chunk),
        in_specs=[
            pl.BlockSpec((tile_b, D), in_map),
            pl.BlockSpec((tile_b, D), in_map),
        ],
        out_specs=pl.BlockSpec((1, 8, 128), lambda c, t: (c, 0, 0)),
        scratch_shapes=[pltpu.VMEM((tile_b, 1), jnp.float32)],
        compiler_params=pltpu.CompilerParams(
            dimension_semantics=("parallel", "arbitrary"),
            vmem_limit_bytes=vmem_limit),
    )(features1, features2)

    # Finish the reduction outside: sum per-chunk partials, divide by true B.
    return jnp.sum(partials[:, 0, 0]) * jnp.float32(1.0 / B)


def _reference_loss(x1, x2, margin=0.5):
    f1n = x1 / jnp.maximum(jnp.linalg.norm(x1, axis=1, keepdims=True), 1e-12)
    f2n = x2 / jnp.maximum(jnp.linalg.norm(x2, axis=1, keepdims=True), 1e-12)
    sim = jnp.sum(f1n * f2n, axis=1) / jnp.maximum(
        jnp.linalg.norm(f1n, axis=1) * jnp.linalg.norm(f2n, axis=1), 1e-8)
    return jnp.mean(jnp.maximum(sim + margin, 0.0) ** 2)


if __name__ == "__main__":
    key = jax.random.PRNGKey(0)
    k1, k2, k3, k4 = jax.random.split(key, 4)

    # Case 1: small batch, ragged tiles, forced 2-chunk parallel axis
    # (exercises clamped out-of-range block + row masking + per-chunk partials).
    B, D = 20, 128
    f1 = jax.random.normal(k1, (B, D), dtype=jnp.float32)
    f2 = jax.random.normal(k2, (B, D), dtype=jnp.float32)
    ref = _reference_loss(f1, f2, margin=0.5)
    loss_tiled = contrastive_loss(f1, f2, margin=0.5, temperature=0.07,
                                  tile_b=8, n_par=2)
    jax.block_until_ready(loss_tiled)
    assert jnp.allclose(loss_tiled, ref, atol=1e-5, rtol=1e-5), (loss_tiled, ref)

    # Case 2: default auto-sized path (single full-batch block).
    loss_default = contrastive_loss(f1, f2, margin=0.5, temperature=0.07)
    jax.block_until_ready(loss_default)
    assert jnp.allclose(loss_default, ref, atol=1e-5, rtol=1e-5), (loss_default, ref)

    # Case 3: even tile count, 2 chunks, D not a multiple of 128.
    B2, D2 = 64, 96
    g1 = jax.random.normal(k3, (B2, D2), dtype=jnp.float32)
    g2 = jax.random.normal(k4, (B2, D2), dtype=jnp.float32)
    ref2 = _reference_loss(g1, g2, margin=0.5)
    loss2 = contrastive_loss(g1, g2, margin=0.5, temperature=0.07,
                             tile_b=16, n_par=2)
    jax.block_until_ready(loss2)
    assert jnp.allclose(loss2, ref2, atol=1e-5, rtol=1e-5), (loss2, ref2)

    print("KERNEL_OK")
</pallas_src>

<mosaic_0001>
module attributes {stable_mosaic.version = 11 : i64} {
  func.func @_contrastive_loss_kernel(%arg0: i32, %arg1: i32, %arg2: memref<8x128xf32, #tpu.memory_space<vmem>>, %arg3: memref<8x128xf32, #tpu.memory_space<vmem>>, %arg4: memref<1x8x128xf32, #tpu.memory_space<vmem>>, %arg5: memref<8x1xf32, #tpu.memory_space<vmem>>) attributes {dimension_semantics = [#tpu.dimension_semantics<parallel>, #tpu.dimension_semantics<arbitrary>], iteration_bounds = array<i64: 2, 2>, scalar_prefetch = 0 : i64, scratch_operands = 1 : i64, tpu.core_type = #tpu.core_type<tc>, window_params = [{transform_indices = @transform_0, window_bounds = array<i64: 8, 128>}, {transform_indices = @transform_1, window_bounds = array<i64: 8, 128>}, {transform_indices = @transform_2, window_bounds = array<i64: 1, 8, 128>}]} {
    %c2_i32 = arith.constant 2 : i32
    %0 = arith.muli %arg0, %c2_i32 : i32
    %1 = arith.addi %0, %arg1 : i32
    %c0_i32 = arith.constant 0 : i32
    %2 = arith.cmpi eq, %arg1, %c0_i32 : i32
    %3 = arith.extui %2 : i1 to i32
    %c0_i32_0 = arith.constant 0 : i32
    %4 = arith.cmpi ne, %3, %c0_i32_0 : i32
    scf.if %4 {
      %cst_14 = arith.constant 0.000000e+00 : f32
      %40 = vector.broadcast %cst_14 : f32 to vector<8x1xf32>
      %c0_15 = arith.constant 0 : index
      %c0_16 = arith.constant 0 : index
      %41 = vector.load %arg5[%c0_15, %c0_16] : memref<8x1xf32, #tpu.memory_space<vmem>>, vector<8x1xf32>
      tpu.vector_store %arg5[%c0_15, %c0_16], %40 {strides = array<i32>} : memref<8x1xf32, #tpu.memory_space<vmem>>, vector<8x1xf32>,
    } else {
    }
    %c0 = arith.constant 0 : index
    %c0_1 = arith.constant 0 : index
    %5 = vector.load %arg2[%c0, %c0_1] : memref<8x128xf32, #tpu.memory_space<vmem>>, vector<8x128xf32>
    %c0_2 = arith.constant 0 : index
    %c0_3 = arith.constant 0 : index
    %6 = vector.load %arg3[%c0_2, %c0_3] : memref<8x128xf32, #tpu.memory_space<vmem>>, vector<8x128xf32>
    %7 = arith.mulf %5, %5 : vector<8x128xf32>
    %cst = arith.constant dense<0.000000e+00> : vector<8xf32>
    %8 = vector.multi_reduction <add>, %7, %cst [1] : vector<8x128xf32> to vector<8xf32>
    %9 = vector.shape_cast %8 : vector<8xf32> to vector<8x1xf32>
    %10 = arith.mulf %6, %6 : vector<8x128xf32>
    %cst_4 = arith.constant dense<0.000000e+00> : vector<8xf32>
    %11 = vector.multi_reduction <add>, %10, %cst_4 [1] : vector<8x128xf32> to vector<8xf32>
    %12 = vector.shape_cast %11 : vector<8xf32> to vector<8x1xf32>
    %13 = arith.mulf %5, %6 : vector<8x128xf32>
    %cst_5 = arith.constant dense<0.000000e+00> : vector<8xf32>
    %14 = vector.multi_reduction <add>, %13, %cst_5 [1] : vector<8x128xf32> to vector<8xf32>
    %15 = vector.shape_cast %14 : vector<8xf32> to vector<8x1xf32>
    %cst_6 = arith.constant 1.000000e-24 : f32
    %16 = vector.broadcast %cst_6 : f32 to vector<8x1xf32>
    %17 = arith.maximumf %9, %16 : vector<8x1xf32>
    %18 = math.rsqrt %17 : vector<8x1xf32>
    %cst_7 = arith.constant 1.000000e-24 : f32
    %19 = vector.broadcast %cst_7 : f32 to vector<8x1xf32>
    %20 = arith.maximumf %12, %19 : vector<8x1xf32>
    %21 = math.rsqrt %20 : vector<8x1xf32>
    %22 = arith.mulf %15, %18 : vector<8x1xf32>
    %23 = arith.mulf %22, %21 : vector<8x1xf32>
    %cst_8 = arith.constant 5.000000e-01 : f32
    %24 = vector.broadcast %cst_8 : f32 to vector<8x1xf32>
    %25 = arith.addf %23, %24 : vector<8x1xf32>
    %cst_9 = arith.constant 0.000000e+00 : f32
    %26 = vector.broadcast %cst_9 : f32 to vector<8x1xf32>
    %27 = arith.maximumf %25, %26 : vector<8x1xf32>
    %28 = arith.mulf %27, %27 : vector<8x1xf32>
    %c1_i32 = arith.constant 1 : i32
    %29 = arith.addi %1, %c1_i32 : i32
    %c8_i32 = arith.constant 8 : i32
    %30 = arith.muli %29, %c8_i32 : i32
    %c20_i32 = arith.constant 20 : i32
    %31 = arith.cmpi sgt, %30, %c20_i32 : i32
    %32 = arith.extui %31 : i1 to i32
    %c0_i32_10 = arith.constant 0 : i32
    %33 = arith.cmpi ne, %32, %c0_i32_10 : i32
    scf.if %33 {
      %c8_i32_14 = arith.constant 8 : i32
      %40 = arith.muli %1, %c8_i32_14 : i32
      %41 = tpu.iota {dimensions = array<i32: 0>} : vector<8x1xi32>
      %42 = vector.broadcast %40 : i32 to vector<8x1xi32>
      %43 = arith.addi %42, %41 : vector<8x1xi32>
      %c0_15 = arith.constant 0 : index
      %c0_16 = arith.constant 0 : index
      %44 = vector.load %arg5[%c0_15, %c0_16] : memref<8x1xf32, #tpu.memory_space<vmem>>, vector<8x1xf32>
      %c20_i32_17 = arith.constant 20 : i32
      %45 = vector.broadcast %c20_i32_17 : i32 to vector<8x1xi32>
      %46 = arith.cmpi slt, %43, %45 : vector<8x1xi32>
      %cst_18 = arith.constant 0.000000e+00 : f32
      %47 = vector.broadcast %cst_18 : f32 to vector<8x1xf32>
      %48 = arith.select %46, %28, %47 : vector<8x1xi1>, vector<8x1xf32>
      %49 = arith.addf %44, %48 : vector<8x1xf32>
      %c0_19 = arith.constant 0 : index
      %c0_20 = arith.constant 0 : index
      %50 = vector.load %arg5[%c0_19, %c0_20] : memref<8x1xf32, #tpu.memory_space<vmem>>, vector<8x1xf32>
      tpu.vector_store %arg5[%c0_19, %c0_20], %49 {strides = array<i32>} : memref<8x1xf32, #tpu.memory_space<vmem>>, vector<8x1xf32>,
    } else {
    }
    %true = arith.constant true
    %34 = arith.xori %31, %true : i1
    %35 = arith.extui %34 : i1 to i32
    %c0_i32_11 = arith.constant 0 : i32
    %36 = arith.cmpi ne, %35, %c0_i32_11 : i32
    scf.if %36 {
      %c0_14 = arith.constant 0 : index
      %c0_15 = arith.constant 0 : index
      %40 = vector.load %arg5[%c0_14, %c0_15] : memref<8x1xf32, #tpu.memory_space<vmem>>, vector<8x1xf32>
      %41 = arith.addf %40, %28 : vector<8x1xf32>
      %c0_16 = arith.constant 0 : index
      %c0_17 = arith.constant 0 : index
      %42 = vector.load %arg5[%c0_16, %c0_17] : memref<8x1xf32, #tpu.memory_space<vmem>>, vector<8x1xf32>
      tpu.vector_store %arg5[%c0_16, %c0_17], %41 {strides = array<i32>} : memref<8x1xf32, #tpu.memory_space<vmem>>, vector<8x1xf32>,
    } else {
    }
    %c1_i32_12 = arith.constant 1 : i32
    %37 = arith.cmpi eq, %arg1, %c1_i32_12 : i32
    %38 = arith.extui %37 : i1 to i32
    %c0_i32_13 = arith.constant 0 : i32
    %39 = arith.cmpi ne, %38, %c0_i32_13 : i32
    scf.if %39 {
      %c0_14 = arith.constant 0 : index
      %c0_15 = arith.constant 0 : index
      %40 = vector.load %arg5[%c0_14, %c0_15] : memref<8x1xf32, #tpu.memory_space<vmem>>, vector<8x1xf32>
      %41 = vector.shape_cast %40 : vector<8x1xf32> to vector<1x8x1xf32>
      %cst_16 = arith.constant dense<0.000000e+00> : vector<1xf32>
      %42 = vector.multi_reduction <add>, %41, %cst_16 [1, 2] : vector<1x8x1xf32> to vector<1xf32>
      %43 = vector.shape_cast %42 : vector<1xf32> to vector<1x1x1xf32>
      %44 = vector.extract %43[0, 0, 0] : f32 from vector<1x1x1xf32>
      %45 = vector.broadcast %44 : f32 to vector<1x8x128xf32>
      %c0_17 = arith.constant 0 : index
      %c0_18 = arith.constant 0 : index
      %c0_19 = arith.constant 0 : index
      %46 = vector.load %arg4[%c0_17, %c0_18, %c0_19] : memref<1x8x128xf32, #tpu.memory_space<vmem>>, vector<1x8x128xf32>
      tpu.vector_store %arg4[%c0_17, %c0_18, %c0_19], %45 {strides = array<i32>} : memref<1x8x128xf32, #tpu.memory_space<vmem>>, vector<1x8x128xf32>,
    } else {
    }
    return
  }
  func.func @transform_0(%arg0: i32, %arg1: i32) -> (i32, i32) {
    %c2_i32 = arith.constant 2 : i32
    %0 = arith.muli %arg0, %c2_i32 : i32
    %1 = arith.addi %0, %arg1 : i32
    %c2_i32_0 = arith.constant 2 : i32
    %2 = arith.minsi %1, %c2_i32_0 : i32
    %c0_i32 = arith.constant 0 : i32
    %c0_i32_1 = arith.constant 0 : i32
    return %2, %c0_i32 : i32, i32
  }
  func.func @transform_1(%arg0: i32, %arg1: i32) -> (i32, i32) {
    %c2_i32 = arith.constant 2 : i32
    %0 = arith.muli %arg0, %c2_i32 : i32
    %1 = arith.addi %0, %arg1 : i32
    %c2_i32_0 = arith.constant 2 : i32
    %2 = arith.minsi %1, %c2_i32_0 : i32
    %c0_i32 = arith.constant 0 : i32
    %c0_i32_1 = arith.constant 0 : i32
    return %2, %c0_i32 : i32, i32
  }
  func.func @transform_2(%arg0: i32, %arg1: i32) -> (i32, i32, i32) {
    %c0_i32 = arith.constant 0 : i32
    %c0_i32_0 = arith.constant 0 : i32
    %c0_i32_1 = arith.constant 0 : i32
    return %arg0, %c0_i32, %c0_i32_0 : i32, i32, i32
  }
}

</mosaic_0001>

<llo_original>
// kernel: tpu_custom_call.1
$region0: #{tpu_custom_call.1}
  #allocation0 [shape = 'u32[]', space=smem, size = 0x4, offset = 0x4, fixed_abs, tag = 'smem constant byte address 0x4 - core index']
  #allocation1 [shape = 'u32[144,128]{1,0:T(1,128)}', space=vmem, size = 0x12000, scoped, tag = 'internal scratch']
  #allocation2 [shape = 'f32[8,1]{1,0:T(8,128)}', space=vmem, size = 0x1000, scoped, tag = 'scratch operand']
  %s0 = inlined_call_operand.hbm [shape: f32[20,128], index: 0, kind: input, shape index: {}]
  %s1 = inlined_call_operand.hbm [shape: f32[20,128], index: 1, kind: input, shape index: {}]
  %s2 = inlined_call_operand.hbm [shape: f32[2,8,128], index: 2, kind: output, shape index: {}]
  %s3 = sld [smem:[#allocation0]]
  $region65: #{tpu_custom_call.1} parent=0
    _
  %s5 = ssub.s32 1, %s3
  %s6 = scalar_select 0, %s5, %s3
  $region1: #{tpu_custom_call.1} parent=0
    #allocation3 [shape = 'u8[8192]{0}', space=vmem, size = 0x2000, scoped, tag = 'input window, operand 0']
    #allocation4 [shape = 's32[2]{0}', space=sflag, size = 0x8, scoped, tag = 'scoped memory for tpu_custom_call.1']
    #allocation5 [shape = 's32[2]{0}', space=sflag, size = 0x8, scoped, tag = 'scoped memory for tpu_custom_call.1']
    #allocation6 [shape = 'u8[8192]{0}', space=vmem, size = 0x2000, scoped, tag = 'input window, operand 1']
    #allocation7 [shape = 's32[2]{0}', space=sflag, size = 0x8, scoped, tag = 'scoped memory for tpu_custom_call.1']
    #allocation8 [shape = 'u8[8192]{0}', space=vmem, size = 0x2000, scoped, tag = 'output window, operand 0']
    %7 = vsyncpa [#allocation4], 0
    %s8 = scalar_lea.sflag [#allocation4], 1
    %9 = vsyncpa %s8, 0
    %10 = vsyncpa [#allocation7], 0
    %s11 = scalar_lea.sflag [#allocation7], 1
    %12 = vsyncpa %s11, 0
    %13 = vsyncpa [#allocation5], 0
    %s14 = scalar_lea.sflag [#allocation5], 1
    %15 = vsyncpa %s14, 0
    loop: start=0, step=1, limit=6
    $region2: #{tpu_custom_call.1} parent=1 // loop_pre_header
      _
    $region3: #{tpu_custom_call.1} parent=1 // loop_header
      %s17 = sphi 0, %s21
      %p18 = scmp.ge.s32.totalorder %s17, 6
      %s24 = sphi 0, %s36
      %s25 = sphi 0, %s32
      %s26 = sphi 0, %s24
      %s27 = sphi 0, %s25
      %s28 = sphi 0, %s26
      %s29 = sphi 0, %s27
      %s47 = sphi 0, %s49
      %s50 = sphi 0, %s47
      %s51 = sphi 0, %s50
      %s67 = sphi 0, %s51
      %s81 = sphi 0, %s83
      %s84 = sphi 0, %s81
      %s85 = sphi 0, %s84
      %s101 = sphi 0, %s85
      %s107 = sphi 0, %s109
      %s110 = sphi 0, %s107
      %s111 = sphi 0, %s110
      %s127 = sphi 0, %s111
    $region4: #{tpu_custom_call.1} parent=1 // loop_header_branch
      %20 = sbr.rel (%p18) target = $region8
    $region5: #{tpu_custom_call.1} parent=1 // loop_body
      %s22 = ssub.s32 %s17, 1
      %s23 = ssub.s32 %s17, 2
      %s30 = sadd.s32 1, %s25
      %p31 = scmp.ge.s32.totalorder %s30, 2
      %s32 = scalar_select %p31, 0, %s30
      %s33 = sadd.s32 1, %s24
      %s34 = scalar_select %p31, %s33, %s24
      %p35 = scmp.ge.s32.totalorder %s34, 2
      %s36 = scalar_select %p35, 0, %s34
      %s37 = smul.u32 %s24, 2
      %s38 = sadd.s32 %s37, %s25
      %p39 = scmp.lt.s32.totalorder %s38, 2
      %s40 = scalar_select %p39, %s38, 2
      %s41 = smul.u32 %s36, 2
      %s42 = sadd.s32 %s41, %s32
      %p43 = scmp.lt.s32.totalorder %s42, 2
      %s44 = scalar_select %p43, %s42, 2
      %s45 = ssub.s32 %s40, %s44
      %p46 = scmp.eq.s32.totalorder %s45, 0
      %s48 = sadd.s32 %s47, 1
      %s49 = scalar_select %p46, %s47, %s48
      %p52 = pneg %p46
      %p53 = scmp.eq.s32.totalorder %s17, 3
      %p54 = por %p52, %p53
      %p55 = scmp.ne.s32.totalorder %s47, %s50
      %p56 = scmp.eq.s32.totalorder %s17, 0
      %p57 = por %p55, %p56
      %p58 = scmp.ne.s32.totalorder %s47, %s50
      %p59 = scmp.eq.s32.totalorder %s22, 3
      %p60 = por %p58, %p59
      %p61 = scmp.ne.s32.totalorder %s50, %s51
      %p62 = scmp.eq.s32.totalorder %s22, 0
      %p63 = por %p61, %p62
      %p64 = scmp.ne.s32.totalorder %s50, %s51
      %p65 = scmp.eq.s32.totalorder %s23, 3
      %p66 = por %p64, %p65
      %p68 = scmp.ne.s32.totalorder %s51, %s67
      %p69 = scmp.eq.s32.totalorder %s23, 0
      %p70 = por %p68, %p69
      %s71 = smul.u32 %s24, 2
      %s72 = sadd.s32 %s71, %s25
      %p73 = scmp.lt.s32.totalorder %s72, 2
      %s74 = scalar_select %p73, %s72, 2
      %s75 = smul.u32 %s36, 2
      %s76 = sadd.s32 %s75, %s32
      %p77 = scmp.lt.s32.totalorder %s76, 2
      %s78 = scalar_select %p77, %s76, 2
      %s79 = ssub.s32 %s74, %s78
      %p80 = scmp.eq.s32.totalorder %s79, 0
      %s82 = sadd.s32 %s81, 1
      %s83 = scalar_select %p80, %s81, %s82
      %p86 = pneg %p80
      %p87 = scmp.eq.s32.totalorder %s17, 3
      %p88 = por %p86, %p87
      %p89 = scmp.ne.s32.totalorder %s81, %s84
      %p90 = scmp.eq.s32.totalorder %s17, 0
      %p91 = por %p89, %p90
      %p92 = scmp.ne.s32.totalorder %s81, %s84
      %p93 = scmp.eq.s32.totalorder %s22, 3
      %p94 = por %p92, %p93
      %p95 = scmp.ne.s32.totalorder %s84, %s85
      %p96 = scmp.eq.s32.totalorder %s22, 0
      %p97 = por %p95, %p96
      %p98 = scmp.ne.s32.totalorder %s84, %s85
      %p99 = scmp.eq.s32.totalorder %s23, 3
      %p100 = por %p98, %p99
      %p102 = scmp.ne.s32.totalorder %s85, %s101
      %p103 = scmp.eq.s32.totalorder %s23, 0
      %p104 = por %p102, %p103
      %s105 = ssub.s32 %s24, %s36
      %p106 = scmp.eq.s32.totalorder %s105, 0
      %s108 = sadd.s32 %s107, 1
      %s109 = scalar_select %p106, %s107, %s108
      %p112 = pneg %p106
      %p113 = scmp.eq.s32.totalorder %s17, 3
      %p114 = por %p112, %p113
      %p115 = scmp.ne.s32.totalorder %s107, %s110
      %p116 = scmp.eq.s32.totalorder %s17, 0
      %p117 = por %p115, %p116
      %p118 = scmp.ne.s32.totalorder %s107, %s110
      %p119 = scmp.eq.s32.totalorder %s22, 3
      %p120 = por %p118, %p119
      %p121 = scmp.ne.s32.totalorder %s110, %s111
      %p122 = scmp.eq.s32.totalorder %s22, 0
      %p123 = por %p121, %p122
      %p124 = scmp.ne.s32.totalorder %s110, %s111
      %p125 = scmp.eq.s32.totalorder %s23, 3
      %p126 = por %p124, %p125
      %p128 = scmp.ne.s32.totalorder %s111, %s127
      %p129 = scmp.eq.s32.totalorder %s23, 0
      %p130 = por %p128, %p129
      %p131 = scmp.le.s32.totalorder 1, %s17
      %p132 = scmp.lt.s32.totalorder %s17, 5
      %p133 = pnand %p131, %p132
      %p134 = pneg %p133
      // Predicated region
      $region9: #{tpu_custom_call.1} parent=5 // pred_check
        _
      $region10: #{tpu_custom_call.1} parent=5 // pred_check_branch
        %136 = sbr.rel (%p133) target = $region12
      $region11: #{tpu_custom_call.1} parent=5 // pred_region
        %s137 = ssub.s32 %s17, 1
      $region12: #{tpu_custom_call.1} parent=5 // pred_fallthru
        _
      %p138 = scmp.lt.s32.totalorder %s17, 4
      // Predicated region
      $region13: #{tpu_custom_call.1} parent=5 // pred_check
        %p139 = pneg %p138
      $region14: #{tpu_custom_call.1} parent=5 // pred_check_branch
        %141 = sbr.rel (%p139) target = $region16
      $region15: #{tpu_custom_call.1} parent=5 // pred_region
        // Predicated region
        $region17: #{tpu_custom_call.1} parent=15 // pred_check
          %p142 = pneg %p57
        $region18: #{tpu_custom_call.1} parent=15 // pred_check_branch
          %144 = sbr.rel (%p142) target = $region20
        $region19: #{tpu_custom_call.1} parent=15 // pred_region
          %s145 = sand.u32 %s47, 1
          %s146 = scalar_lea.sflag [#allocation4], %s145
          %s147 = sand.u32 %s47, 1
          %s148 = smul.addr %s147, 8
          %s149 = scalar_lea.vmem [#allocation3], %s148
          %s150 = smul.u32 %s24, 2
          %s151 = sadd.s32 %s150, %s25
          %p152 = scmp.lt.s32.totalorder %s151, 2
          %s153 = scalar_select %p152, %s151, 2
          %s155 = ssub.s32 128, 128
          %156 = vsyncadd %s146, %s155
          %s157 = smul.addr %s153, 128
          %s158 = scalar_lea.hbm %s0, %s157
          %s160 = sshll.u32 %s149, 4
          %s161 = int_to_ptr.vmem [resolvable:$true] %s160
          %163 = dma.hbm_to_vmem [thread:$0]  %s158, 128, %s161, %s146
        $region20: #{tpu_custom_call.1} parent=15 // pred_fallthru
          _
        // Predicated region
        $region21: #{tpu_custom_call.1} parent=15 // pred_check
          %p164 = pneg %p91
        $region22: #{tpu_custom_call.1} parent=15 // pred_check_branch
          %166 = sbr.rel (%p164) target = $region24
        $region23: #{tpu_custom_call.1} parent=15 // pred_region
          %s167 = sand.u32 %s81, 1
          %s168 = scalar_lea.sflag [#allocation7], %s167
          %s169 = sand.u32 %s81, 1
          %s170 = smul.addr %s169, 8
          %s171 = scalar_lea.vmem [#allocation6], %s170
          %s172 = smul.u32 %s24, 2
          %s173 = sadd.s32 %s172, %s25
          %p174 = scmp.lt.s32.totalorder %s173, 2
          %s175 = scalar_select %p174, %s173, 2
          %s177 = ssub.s32 128, 128
          %178 = vsyncadd %s168, %s177
          %s179 = smul.addr %s175, 128
          %s180 = scalar_lea.hbm %s1, %s179
          %s182 = sshll.u32 %s171, 4
          %s183 = int_to_ptr.vmem [resolvable:$true] %s182
          %185 = dma.hbm_to_vmem [thread:$0]  %s180, 128, %s183, %s168
        $region24: #{tpu_custom_call.1} parent=15 // pred_fallthru
          _
      $region16: #{tpu_custom_call.1} parent=5 // pred_fallthru
        _
      %p186 = scmp.le.s32.totalorder 1, %s17
      %p187 = scmp.lt.s32.totalorder %s17, 5
      %p188 = pnand %p186, %p187
      %p189 = pneg %p188
      // Predicated region
      $region25: #{tpu_custom_call.1} parent=5 // pred_check
        _
      $region26: #{tpu_custom_call.1} parent=5 // pred_check_branch
        %191 = sbr.rel (%p188) target = $region28
      $region27: #{tpu_custom_call.1} parent=5 // pred_region
        %s192 = ssub.s32 %s17, 1
        %s193 = sand.u32 %s50, 1
        %s194 = scalar_lea.sflag [#allocation4], %s193
        %s195 = sand.u32 %s50, 1
        %s196 = smul.addr %s195, 8
        %s197 = scalar_lea.vmem [#allocation3], %s196
        // Predicated region
        $region29: #{tpu_custom_call.1} parent=27 // pred_check
          %p198 = pneg %p63
        $region30: #{tpu_custom_call.1} parent=27 // pred_check_branch
          %200 = sbr.rel (%p198) target = $region32
        $region31: #{tpu_custom_call.1} parent=27 // pred_region
          %201 = dma.done %s194, 128
        $region32: #{tpu_custom_call.1} parent=27 // pred_fallthru
          _
        %s202 = sand.u32 %s84, 1
        %s203 = scalar_lea.sflag [#allocation7], %s202
        %s204 = sand.u32 %s84, 1
        %s205 = smul.addr %s204, 8
        %s206 = scalar_lea.vmem [#allocation6], %s205
        // Predicated region
        $region33: #{tpu_custom_call.1} parent=27 // pred_check
          %p207 = pneg %p97
        $region34: #{tpu_custom_call.1} parent=27 // pred_check_branch
          %209 = sbr.rel (%p207) target = $region36
        $region35: #{tpu_custom_call.1} parent=27 // pred_region
          %210 = dma.done %s203, 128
        $region36: #{tpu_custom_call.1} parent=27 // pred_fallthru
          _
        %s211 = sand.u32 %s50, 1
        %s212 = scalar_lea.sflag [#allocation4], %s211
        %s213 = sand.u32 %s50, 1
        %s214 = smul.addr %s213, 8
        %s215 = scalar_lea.vmem [#allocation3], %s214
        %p216 = pneg %p63
        %p217 = pneg %p60
        %s218 = sand.u32 %s84, 1
        %s219 = scalar_lea.sflag [#allocation7], %s218
        %s220 = sand.u32 %s84, 1
        %s221 = smul.addr %s220, 8
        %s222 = scalar_lea.vmem [#allocation6], %s221
        %p223 = pneg %p97
        %p224 = pneg %p94
        %p225 = pneg %p123
        %p226 = pneg %p120
        %s227 = sand.u32 %s110, 1
        %s228 = scalar_lea.sflag [#allocation5], %s227
        %s229 = sand.u32 %s110, 1
        %s230 = smul.addr %s229, 8
        %s231 = scalar_lea.vmem [#allocation8], %s230
        %s232 = smul.u32 %s26, 2
        %s233 = sadd.s32 %s232, %s27
        %p234 = scmp.lt.s32.totalorder %s233, 2
        %s235 = scalar_select %p234, %s233, 2
        %s236 = smul.u32 %s26, 2
        %s237 = sadd.s32 %s236, %s27
        %p238 = scmp.lt.s32.totalorder %s237, 2
        %s239 = scalar_select %p238, %s237, 2
        %s240 = smul.u32 %s26, 2
        %s241 = sadd.s32 %s240, %s27
        %p242 = scmp.eq.s32.totalorder %s27, 0
        // Predicated region
        $region37: #{tpu_custom_call.1} parent=27 // pred_check
          %p243 = pneg %p242
        $region38: #{tpu_custom_call.1} parent=27 // pred_check_branch
          %245 = sbr.rel (%p243) target = $region40
        $region39: #{tpu_custom_call.1} parent=27 // pred_region
          %vm246 = vcmask 7168
          %247 = vst.msk [vmem:[#allocation2] sm:$0xff] %vm246, 0.0
        $region40: #{tpu_custom_call.1} parent=27 // pred_fallthru
          _
        %v248 = vld [vmem:[%s197] sm:$0xff]
        %v249 = vld [vmem:[%s206] sm:$0xff]
        %v250 = vmul.f32 %v248, %v248
        %251 = vadd.xlane.f32.xlu0 %v250
        %v252 = vpop.xlane.xlu0 %251
        %v253 = vmul.f32 %v249, %v249
        %254 = vadd.xlane.f32.xlu0 %v253
        %v255 = vpop.xlane.xlu0 %254
        %v256 = vmul.f32 %v248, %v249
        %257 = vadd.xlane.f32.xlu0 %v256
        %v258 = vpop.xlane.xlu0 %257
        %v259 = vmax.f32 %v252, 1e-24
        %v260 = vrsqrt.pop %v259
        %v261 = vmax.f32 %v255, 1e-24
        %v262 = vrsqrt.pop %v261
        %v263 = vmul.f32 %v258, %v260
        %v264 = vmul.f32 %v263, %v262
        %v265 = vadd.f32 %v264, 0.5
        %v266 = vmax.f32 %v265, 0.0
        %v267 = vmul.f32 %v266, %v266
        %s268 = sadd.s32 %s241, 1
        %s269 = smul.u32 %s268, 8
        %p270 = scmp.gt.s32.totalorder %s269, 20
        // Predicated region
        $region41: #{tpu_custom_call.1} parent=27 // pred_check
          %p271 = pneg %p270
        $region42: #{tpu_custom_call.1} parent=27 // pred_check_branch
          %273 = sbr.rel (%p271) target = $region44
        $region43: #{tpu_custom_call.1} parent=27 // pred_region
          %s274 = smul.u32 %s241, 8
          %v275 = vlaneseq
          %v276 = vshrl.u32 %v275, 7
          %v277 = vstv %s274
          %v278 = vadd.s32 %v277, %v276
          %v279 = vld [vmem:[#allocation2] sm:$0xff]
          %vm280 = vcmp.lt.s32.totalorder %v278, 20
          %v281 = vsel %vm280, %v267, 0.0
          %v282 = vadd.f32 %v279, %v281
          %vm283 = vcmask 7168
          %284 = vst.msk [vmem:[#allocation2] sm:$0xff] %vm283, %v282
        $region44: #{tpu_custom_call.1} parent=27 // pred_fallthru
          _
        %p285 = scmp.le.s32.totalorder %s269, 20
        // Predicated region
        $region45: #{tpu_custom_call.1} parent=27 // pred_check
          %p286 = pneg %p285
        $region46: #{tpu_custom_call.1} parent=27 // pred_check_branch
          %288 = sbr.rel (%p286) target = $region48
        $region47: #{tpu_custom_call.1} parent=27 // pred_region
          %v289 = vld [vmem:[#allocation2] sm:$0xff]
          %v290 = vadd.f32 %v289, %v267
          %vm291 = vcmask 7168
          %292 = vst.msk [vmem:[#allocation2] sm:$0xff] %vm291, %v290
        $region48: #{tpu_custom_call.1} parent=27 // pred_fallthru
          _
        %p293 = scmp.eq.s32.totalorder %s27, 1
        // Predicated region
        $region49: #{tpu_custom_call.1} parent=27 // pred_check
          %p294 = pneg %p293
        $region50: #{tpu_custom_call.1} parent=27 // pred_check_branch
          %296 = sbr.rel (%p294) target = $region52
        $region51: #{tpu_custom_call.1} parent=27 // pred_region
          %v297 = vld [vmem:[#allocation2] sm:$0xff]
          %vm298 = vcmask 7168
          %v299 = vsel %vm298, %v297, 0.0
          %300 = vadd.xlane.f32.xlu0 %v299
          %v301 = vpop.xlane.xlu0 %300
          %v302 = vrot.slane %v301, 4
          %v303 = vadd.f32 %v301, %v302
          %v304 = vrot.slane %v303, 2
          %v305 = vadd.f32 %v303, %v304
          %v306 = vrot.slane %v305, 1
          %v307 = vadd.f32 %v305, %v306
          %s308 = vtos %v307
          %v309 = vstv %s308
          %310 = vst [vmem:[%s231] sm:$0xff] %v309
        $region52: #{tpu_custom_call.1} parent=27 // pred_fallthru
          _
        %s311 = sand.u32 %s110, 1
        %s312 = scalar_lea.sflag [#allocation5], %s311
        %s313 = sand.u32 %s110, 1
        %s314 = smul.addr %s313, 8
        %s315 = scalar_lea.vmem [#allocation8], %s314
        // Predicated region
        $region53: #{tpu_custom_call.1} parent=27 // pred_check
          %p316 = pneg %p120
        $region54: #{tpu_custom_call.1} parent=27 // pred_check_branch
          %318 = sbr.rel (%p316) target = $region56
        $region55: #{tpu_custom_call.1} parent=27 // pred_region
          %s320 = ssub.s32 128, 128
          %321 = vsyncadd %s312, %s320
          %s322 = smul.addr %s26, 128
          %s323 = scalar_lea.hbm %s2, %s322
          %s325 = sshll.u32 %s315, 4
          %s326 = int_to_ptr.vmem [resolvable:$true] %s325
          %328 = dma.vmem_to_hbm [thread:$0]  %s326, 128, %s323, %s312
        $region56: #{tpu_custom_call.1} parent=27 // pred_fallthru
          _
      $region28: #{tpu_custom_call.1} parent=5 // pred_fallthru
        _
      %p329 = scmp.le.s32.totalorder 2, %s17
      // Predicated region
      $region57: #{tpu_custom_call.1} parent=5 // pred_check
        %p330 = pneg %p329
      $region58: #{tpu_custom_call.1} parent=5 // pred_check_branch
        %332 = sbr.rel (%p330) target = $region60
      $region59: #{tpu_custom_call.1} parent=5 // pred_region
        %s333 = ssub.s32 %s17, 2
        // Predicated region
        $region61: #{tpu_custom_call.1} parent=59 // pred_check
          %p334 = pneg %p126
        $region62: #{tpu_custom_call.1} parent=59 // pred_check_branch
          %336 = sbr.rel (%p334) target = $region64
        $region63: #{tpu_custom_call.1} parent=59 // pred_region
          %s337 = sand.u32 %s111, 1
          %s338 = scalar_lea.sflag [#allocation5], %s337
          %s339 = sand.u32 %s111, 1
          %s340 = smul.addr %s339, 8
          %s341 = scalar_lea.vmem [#allocation8], %s340
          %342 = dma.done %s338, 128
        $region64: #{tpu_custom_call.1} parent=59 // pred_fallthru
          _
      $region60: #{tpu_custom_call.1} parent=5 // pred_fallthru
        _
    $region6: #{tpu_custom_call.1} parent=1 // loop_footer
      %s21 = sadd.s32 1, %s17
    $region7: #{tpu_custom_call.1} parent=1 // loop_footer_branch
      %16 = sbr.rel target = $region3
    $region8: #{tpu_custom_call.1} parent=1 // loop_exit
      _
    %343 = vsyncpa [#allocation4], 1
    %s344 = scalar_lea.sflag [#allocation4], 1
    %345 = vsyncpa %s344, 1
    %346 = vsyncpa [#allocation7], 1
    %s347 = scalar_lea.sflag [#allocation7], 1
    %348 = vsyncpa %s347, 1
    %349 = vsyncpa [#allocation5], 1
    %s350 = scalar_lea.sflag [#allocation5], 1
    %351 = vsyncpa %s350, 1

</llo_original>
